<compile_context>
chip_gen: v5e
topology: v5e:2x2
jax: 0.10.0
libtpu: 0.0.40
codegen_flags: <defaults>
</compile_context>

<pallas_src>
import jax
import jax.numpy as jnp
import numpy as np
from jax import lax
from jax.experimental import pallas as pl
from jax.experimental.pallas import tpu as pltpu

EPS = 1e-5  # PyTorch GroupNorm default eps

# ---------------------------------------------------------------------------
# One-time probe of pltpu.roll's shift direction (XLU rotate).  Guarantees the
# tap offsets below are correct regardless of the rotate convention.
# ---------------------------------------------------------------------------
_ROLL_LIKE_JNP = None


def _roll_matches_jnp():
    global _ROLL_LIKE_JNP
    if _ROLL_LIKE_JNP is None:
        def probe(x_ref, o_ref):
            o_ref[...] = pltpu.roll(x_ref[...], 1, axis=1)

        x = jnp.arange(8 * 128, dtype=jnp.float32).reshape(8, 128)
        got = np.asarray(jax.block_until_ready(pl.pallas_call(
            probe, out_shape=jax.ShapeDtypeStruct((8, 128), jnp.float32))(x)))
        xr = np.asarray(x)
        if np.array_equal(got, np.roll(xr, 1, axis=1)):
            _ROLL_LIKE_JNP = True       # out[i] = in[i - shift]  (jnp.roll)
        elif np.array_equal(got, np.roll(xr, -1, axis=1)):
            _ROLL_LIKE_JNP = False      # out[i] = in[i + shift]
        else:
            raise RuntimeError("could not determine pltpu.roll direction")
    return _ROLL_LIKE_JNP


# ---------------------------------------------------------------------------
# Kernel builder
# ---------------------------------------------------------------------------
def make_kernel(*, H, W, Cin, Cout, groups, nb, matmul_dtype, roll_like_jnp):
    HW = H * W
    L = nb * HW                      # lane extent of one grid step (Nb*HW)
    Cg = Cout // groups
    inv_cnt = 1.0 / float(Cg * HW)
    mdt = matmul_dtype

    def kernel(x_ref, w1_ref, b1_ref, w2_ref, b2_ref, w3_ref, b3_ref,
               gam_ref, bet_ref, *rest):
        if Cg > 1:
            g2c_ref, c2g_ref, o_ref = rest
            g2c, c2g = g2c_ref[...], c2g_ref[...]
        else:
            (o_ref,) = rest
            g2c = c2g = None

        gamma = gam_ref[...]          # (C, 1) f32
        beta = bet_ref[...]           # (C, 1) f32

        # ----- spatial boundary masks (built once, shared by conv2 & conv3) --
        lane = lax.broadcasted_iota(jnp.int32, (1, L), 1)
        hw_i = lane % HW              # position inside its own sample
        h_i, w_i = hw_i // W, hw_i % W
        row_ok = (h_i >= 1, None, h_i <= H - 2)     # dy = 0, 1, 2
        col_ok = (w_i >= 1, None, w_i <= W - 2)     # dx = 0, 1, 2

        def shifted(v, s):
            """out[:, p] = v[:, p + s] (circular rotate; wrap is masked)."""
            if s == 0:
                return v
            amt = ((-s) % L) if roll_like_jnp else (s % L)
            return pltpu.roll(v, amt, axis=1)

        def dy_taps(v, dy):
            """3 taps of image-row offset dy-1:  (C, L) -> (3*C, L)."""
            taps = []
            for dx in range(3):
                t = shifted(v, (dy - 1) * W + (dx - 1))
                m = row_ok[dy]
                if col_ok[dx] is not None:
                    m = col_ok[dx] if m is None else jnp.logical_and(m, col_ok[dx])
                if m is not None:
                    t = jnp.where(m, t, 0.0)
                taps.append(t)
            return jnp.concatenate(taps, axis=0)

        def conv3x3(v, w_ref, b_ref):
            """3x3 same-pad conv as 3 accumulated dots of K = 3*C (item 4)."""
            acc = None
            for dy in range(3):
                taps = dy_taps(v, dy).astype(mdt)              # (3*C, L)
                p = jnp.dot(w_ref[dy], taps,                   # (Cout, 3*C)
                            preferred_element_type=jnp.float32)
                acc = p if acc is None else acc + p
            return acc + b_ref[...]

        def group_reduce(v):
            # (C, 1) channel sums -> per-group sums broadcast back to channels.
            return jnp.dot(c2g, jnp.dot(g2c, v, preferred_element_type=jnp.float32),
                           preferred_element_type=jnp.float32)

        def gn(y, silu):
            """GroupNorm (+ optional SiLU), per-sample stats, two-pass, f32."""
            outs = []
            for n in range(nb):                      # lane slices are 128-aligned
                yn = y[:, n * HW:(n + 1) * HW]
                s = jnp.sum(yn, axis=1, keepdims=True)          # (C, 1)
                if Cg > 1:
                    s = group_reduce(s)
                mean = s * inv_cnt
                d = yn - mean
                ss = jnp.sum(d * d, axis=1, keepdims=True)
                if Cg > 1:
                    ss = group_reduce(ss)
                o = d * (lax.rsqrt(ss * inv_cnt + EPS) * gamma) + beta
                if silu:
                    o = o * jax.nn.sigmoid(o)
                outs.append(o)
            return outs[0] if nb == 1 else jnp.concatenate(outs, axis=1)

        x = x_ref[...]                                          # (Cin, L) f32

        # ---- branch 1: conv1 (1x1) -> GN -> SiLU -------------------------
        y1 = jnp.dot(w1_ref[...], x.astype(mdt),
                     preferred_element_type=jnp.float32) + b1_ref[...]
        x1 = gn(y1, silu=True)

        # ---- branch 2: conv2 (3x3) -> GN/SiLU -> conv3 (3x3) -> GN/SiLU --
        y2 = conv3x3(x, w2_ref, b2_ref)
        x2 = gn(y2, silu=True)
        y3 = conv3x3(x2, w3_ref, b3_ref)
        x2 = gn(y3, silu=True)

        # ---- merge: add -> GN (no SiLU); (C, L) store is lane-dense ------
        o_ref[...] = gn(x1 + x2, silu=False)

    return kernel


# ---------------------------------------------------------------------------
# Wrapper
# ---------------------------------------------------------------------------
def resnet_conv2d_block(x_nchw, w1, b1, w2, b2, w3, b3, gamma, beta,
                        groups=32, samples_per_step=None,
                        matmul_dtype=jnp.bfloat16):
    """Pallas implementation of resnet_conv2D_block.forward (NCHW inputs)."""
    N, Cin, H, W = x_nchw.shape
    Cout = w1.shape[0]
    assert Cout % groups == 0
    HW = H * W

    nb = N if samples_per_step is None else min(samples_per_step, N)
    assert N % nb == 0, "samples_per_step must divide the batch"
    L = nb * HW

    roll_like_jnp = _roll_matches_jnp()

    f32 = jnp.float32
    mdt = matmul_dtype

    # ---- layout glue (cheap XLA ops): channel-major activations ----------
    x_cm = jnp.transpose(x_nchw.astype(f32), (1, 0, 2, 3)).reshape(Cin, N * HW)

    # weights: per-dy row groups, columns ordered (dx, cin) to match the taps.
    w1m = w1[:, :, 0, 0].astype(mdt)                                    # (C, Cin)
    w2g = jnp.transpose(w2, (2, 0, 3, 1)).reshape(3, Cout, 3 * Cin).astype(mdt)
    w3g = jnp.transpose(w3, (2, 0, 3, 1)).reshape(3, Cout, 3 * Cout).astype(mdt)
    b1r = b1.reshape(Cout, 1).astype(f32)
    b2r = b2.reshape(Cout, 1).astype(f32)
    b3r = b3.reshape(Cout, 1).astype(f32)
    gam = gamma.reshape(Cout, 1).astype(f32)
    bet = beta.reshape(Cout, 1).astype(f32)

    def const_spec(a):
        shape = a.shape
        return pl.BlockSpec(shape, lambda n: (0,) * len(shape))

    in_specs = [pl.BlockSpec((Cin, L), lambda n: (0, n)),
                const_spec(w1m), const_spec(b1r),
                const_spec(w2g), const_spec(b2r),
                const_spec(w3g), const_spec(b3r),
                const_spec(gam), const_spec(bet)]
    args = [x_cm, w1m, b1r, w2g, b2r, w3g, b3r, gam, bet]

    Cg = Cout // groups
    if Cg > 1:
        # (groups, Cout) membership matrix + transpose for broadcast-back
        # (item 7: no (Cout, Cout) f32 gmat).  Dead code for groups == Cout.
        gidx = jnp.arange(Cout) // Cg
        g2c = (jnp.arange(groups)[:, None] == gidx[None, :]).astype(f32)
        c2g = jnp.transpose(g2c)
        in_specs += [const_spec(g2c), const_spec(c2g)]
        args += [g2c, c2g]

    kernel = make_kernel(H=H, W=W, Cin=Cin, Cout=Cout, groups=groups,
                         nb=nb, matmul_dtype=mdt, roll_like_jnp=roll_like_jnp)

    out = pl.pallas_call(
        kernel,
        out_shape=jax.ShapeDtypeStruct((Cout, N * HW), f32),
        grid_spec=pltpu.PrefetchScalarGridSpec(
            num_scalar_prefetch=0,
            grid=(N // nb,),
            in_specs=in_specs,
            out_specs=pl.BlockSpec((Cout, L), lambda n: (0, n)),
        ),
        compiler_params=pltpu.CompilerParams(
            dimension_semantics=("parallel",),
            # Per-step working set is well under 1 MiB at these shapes; raise
            # this together with HW tiling once shapes grow (review item 8).
            vmem_limit_bytes=32 * 1024 * 1024,
        ),
    )(*args)

    # (C, N*HW) -> NCHW (single cheap XLA transpose on the small output).
    return jnp.transpose(out.reshape(Cout, N, H, W), (1, 0, 2, 3))


# ---------------------------------------------------------------------------
# Pure-JAX reference (mirrors the PyTorch module), full-f32 precision.
# ---------------------------------------------------------------------------
def reference(x, w1, b1, w2, b2, w3, b3, gamma, beta, groups=32):
    def conv(v, w, b, pad):
        y = lax.conv_general_dilated(
            v, w, window_strides=(1, 1), padding=((pad, pad), (pad, pad)),
            dimension_numbers=("NCHW", "OIHW", "NCHW"),
            precision=lax.Precision.HIGHEST)
        return y + b[None, :, None, None]

    def gn(v):
        N, C, H, W = v.shape
        vg = v.reshape(N, groups, C // groups, H, W)
        mean = vg.mean(axis=(2, 3, 4), keepdims=True)
        var = vg.var(axis=(2, 3, 4), keepdims=True)
        vg = (vg - mean) / jnp.sqrt(var + EPS)
        v = vg.reshape(N, C, H, W)
        return v * gamma[None, :, None, None] + beta[None, :, None, None]

    def silu(v):
        return v * jax.nn.sigmoid(v)

    x1 = silu(gn(conv(x, w1, b1, 0)))
    x2 = silu(gn(conv(x, w2, b2, 1)))
    x2 = silu(gn(conv(x2, w3, b3, 1)))
    return gn(x1 + x2)


if __name__ == "__main__":
    # GroupNorm(32, out_channels) requires out_channels % 32 == 0 -> Cout = 32.
    N, Cin, Cout, H, W = 2, 4, 32, 16, 16

    key = jax.random.PRNGKey(0)
    ks = jax.random.split(key, 9)
    x = jax.random.normal(ks[0], (N, Cin, H, W), jnp.float32)
    w1 = jax.random.normal(ks[1], (Cout, Cin, 1, 1), jnp.float32) * 0.2
    b1 = jax.random.normal(ks[2], (Cout,), jnp.float32) * 0.1
    w2 = jax.random.normal(ks[3], (Cout, Cin, 3, 3), jnp.float32) * 0.2
    b2 = jax.random.normal(ks[4], (Cout,), jnp.float32) * 0.1
    w3 = jax.random.normal(ks[5], (Cout, Cout, 3, 3), jnp.float32) * 0.1
    b3 = jax.random.normal(ks[6], (Cout,), jnp.float32) * 0.1
    gamma = 1.0 + 0.1 * jax.random.normal(ks[7], (Cout,), jnp.float32)
    beta = 0.1 * jax.random.normal(ks[8], (Cout,), jnp.float32)

    ref = jax.block_until_ready(
        reference(x, w1, b1, w2, b2, w3, b3, gamma, beta))

    # f32 matmul operands: tight numerical check of the kernel math itself.
    out_f32 = jax.block_until_ready(resnet_conv2d_block(
        x, w1, b1, w2, b2, w3, b3, gamma, beta, matmul_dtype=jnp.float32))
    np.testing.assert_allclose(np.asarray(out_f32), np.asarray(ref),
                               rtol=2e-3, atol=2e-3)

    # bf16 matmul operands (MXU-native fast path, f32 accumulation, f32 GN/SiLU).
    # bf16 rounding compounds through conv -> GN -> SiLU -> conv, so the
    # comparison tolerance is correspondingly looser.
    out_bf16 = jax.block_until_ready(resnet_conv2d_block(
        x, w1, b1, w2, b2, w3, b3, gamma, beta, matmul_dtype=jnp.bfloat16))
    np.testing.assert_allclose(np.asarray(out_bf16), np.asarray(ref),
                               rtol=5e-2, atol=5e-2)

    print("KERNEL_OK")
</pallas_src>

<mosaic_0001>
module attributes {stable_mosaic.version = 11 : i64} {
  func.func @probe(%arg0: memref<8x128xf32, #tpu.memory_space<vmem>>, %arg1: memref<8x128xf32, #tpu.memory_space<vmem>>) attributes {dimension_semantics = [], scalar_prefetch = 0 : i64, scratch_operands = 0 : i64, tpu.core_type = #tpu.core_type<tc>} {
    %c0 = arith.constant 0 : index
    %c0_0 = arith.constant 0 : index
    %0 = vector.load %arg0[%c0, %c0_0] : memref<8x128xf32, #tpu.memory_space<vmem>>, vector<8x128xf32>
    %c1_i32 = arith.constant 1 : i32
    %1 = tpu.dynamic_rotate %0 by %c1_i32 dim 1 : vector<8x128xf32>, i32 -> vector<8x128xf32>
    %c0_1 = arith.constant 0 : index
    %c0_2 = arith.constant 0 : index
    %2 = vector.load %arg1[%c0_1, %c0_2] : memref<8x128xf32, #tpu.memory_space<vmem>>, vector<8x128xf32>
    tpu.vector_store %arg1[%c0_1, %c0_2], %1 {strides = array<i32>} : memref<8x128xf32, #tpu.memory_space<vmem>>, vector<8x128xf32>,
    return
  }
}

</mosaic_0001>

<llo_original>
// kernel: tpu_custom_call.1
$region0: #{tpu_custom_call.1}
  #allocation0 [shape = 'u32[]', space=smem, size = 0x4, offset = 0x4, fixed_abs, tag = 'smem constant byte address 0x4 - core index']
  #allocation1 [shape = 'u32[72,128]{1,0:T(1,128)}', space=vmem, size = 0x9000, scoped, tag = 'internal scratch']
  %s0 = inlined_call_operand.hbm [shape: f32[8,128], index: 0, kind: input, shape index: {}]
  %s1 = inlined_call_operand.hbm [shape: f32[8,128], index: 1, kind: output, shape index: {}]
  %s2 = sld [smem:[#allocation0]]
  $region18: #{tpu_custom_call.1} parent=0
    _
  %s4 = ssub.s32 1, %s2
  %s5 = scalar_select 0, %s4, %s2
  $region1: #{tpu_custom_call.1} parent=0
    #allocation2 [shape = 'u8[4096]{0}', space=vmem, size = 0x1000, scoped, tag = 'input window, operand 0, single buffered']
    #allocation3 [shape = 's32[1]{0}', space=sflag, size = 0x4, scoped, tag = 'scoped memory for tpu_custom_call.1']
    #allocation4 [shape = 's32[1]{0}', space=sflag, size = 0x4, scoped, tag = 'scoped memory for tpu_custom_call.1']
    #allocation5 [shape = 'u8[4096]{0}', space=vmem, size = 0x1000, scoped, tag = 'output window, operand 0, single buffered']
    %6 = vsyncpa [#allocation3], 0
    %7 = vsyncpa [#allocation4], 0
    // Predicated region
    $region2: #{tpu_custom_call.1} parent=1 // pred_check
      _
    $region3: #{tpu_custom_call.1} parent=1 // pred_check_branch
      %9 = sbr.rel (0) target = $region5
    $region4: #{tpu_custom_call.1} parent=1 // pred_region
      %11 = vsyncadd [#allocation3], 0
      %s13 = sshll.u32 %s0, 4
      %s14 = int_to_ptr.hbm [resolvable:$true] %s13
      %s15 = sshll.u32 [#allocation2], 4
      %s16 = int_to_ptr.vmem [resolvable:$true] %s15
      %18 = dma.hbm_to_vmem [thread:$0]  %s14, 128, %s16, [#allocation3]
    $region5: #{tpu_custom_call.1} parent=1 // pred_fallthru
      _
    // Predicated region
    $region6: #{tpu_custom_call.1} parent=1 // pred_check
      _
    $region7: #{tpu_custom_call.1} parent=1 // pred_check_branch
      %20 = sbr.rel (0) target = $region9
    $region8: #{tpu_custom_call.1} parent=1 // pred_region
      %22 = dma.done [#allocation3], 128
    $region9: #{tpu_custom_call.1} parent=1 // pred_fallthru
      _
    %v23 = vld [vmem:[#allocation2] sm:$0xff]
    %24 = vrot.lane.b32.xlu0 %v23, 1
    %v25 = vpop.permute.xlu0 %24
    %26 = vst [vmem:[#allocation5] sm:$0xff] %v25
    // Predicated region
    $region10: #{tpu_custom_call.1} parent=1 // pred_check
      _
    $region11: #{tpu_custom_call.1} parent=1 // pred_check_branch
      %28 = sbr.rel (0) target = $region13
    $region12: #{tpu_custom_call.1} parent=1 // pred_region
      %30 = vsyncadd [#allocation4], 0
      %s32 = sshll.u32 [#allocation5], 4
      %s33 = int_to_ptr.vmem [resolvable:$true] %s32
      %s34 = sshll.u32 %s1, 4
      %s35 = int_to_ptr.hbm [resolvable:$true] %s34
      %37 = dma.vmem_to_hbm [thread:$0]  %s33, 128, %s35, [#allocation4]
    $region13: #{tpu_custom_call.1} parent=1 // pred_fallthru
      _
    // Predicated region
    $region14: #{tpu_custom_call.1} parent=1 // pred_check
      _
    $region15: #{tpu_custom_call.1} parent=1 // pred_check_branch
      %39 = sbr.rel (0) target = $region17
    $region16: #{tpu_custom_call.1} parent=1 // pred_region
      %41 = dma.done [#allocation4], 128
    $region17: #{tpu_custom_call.1} parent=1 // pred_fallthru
      _
    %42 = vsyncpa [#allocation3], 1
    %43 = vsyncpa [#allocation4], 1

</llo_original>
